<compile_context>
chip_gen: v5e
topology: v5e:2x2
jax: 0.10.0
libtpu: 0.0.40
codegen_flags: <defaults>
</compile_context>

<pallas_src>
import functools

import jax
import jax.numpy as jnp
from jax.experimental import pallas as pl
from jax.experimental.pallas import tpu as pltpu


def _conv_bn_relu_kernel(x_ref, w_ref, bias_ref, o_ref, *, tile_oh, ow, kh_sz):
    # x_ref:    (H_pad*OW, KW*C)  compute dtype; per-sample KW-packed rows, resident over tiles
    # w_ref:    (KH, KW*C, OC_p)  compute dtype; BN-scale-folded weights, resident
    # bias_ref: (1, OC_p)         f32; folded BN bias (beta - mean * scale)
    # o_ref:    (TILE_OH*OW, OC_p)
    i = pl.program_id(1)                     # OH-tile index within the sample
    tile_rows = tile_oh * ow
    row0 = i * tile_rows

    # Register-resident f32 accumulation: KH matmuls, one store in the epilogue.
    acc = None
    for kh in range(kh_sz):                  # static, fully unrolled (KH is small)
        start = row0 + kh * ow
        if ow % 8 == 0:
            start = pl.multiple_of(start, 8)  # aligned sublane start -> clean loads
        lhs = x_ref[pl.ds(start, tile_rows), :]          # contiguous rows, no relayout
        part = jnp.dot(lhs, w_ref[kh], preferred_element_type=jnp.float32)
        acc = part if acc is None else acc + part

    # BN scale already folded into the weights; epilogue is bias add + ReLU only.
    o_ref[...] = jnp.maximum(acc + bias_ref[...], 0.0).astype(o_ref.dtype)


def _round_up(x, m):
    return ((x + m - 1) // m) * m


def _choose_tile_oh(oh, ow, oc_p, *, acc_budget_bytes=128 * 1024):
    """Largest divisor t of oh whose f32 accumulator (t*ow, oc_p) stays register-resident."""
    max_rows = max(8, acc_budget_bytes // (4 * oc_p))
    legal = [t for t in range(1, oh + 1)
             if oh % t == 0 and ((t * ow) % 8 == 0 or t == oh)]
    fitting = [t for t in legal if t * ow <= max_rows]
    return max(fitting) if fitting else min(legal)   # guard: shrink instead of blowing VMEM


def _vmem_limit_bytes(est_bytes):
    try:
        cap = int(pltpu.get_tpu_info().vmem_capacity_bytes)
    except Exception:                       # conservative fallback sized for v7x
        cap = 64 * 1024 * 1024
    ceiling = (cap * 3) // 4                # headroom for Mosaic internal scratch / semaphores
    if est_bytes > ceiling:
        raise ValueError(
            f"VMEM estimate {est_bytes} B exceeds budget {ceiling} B; "
            "reduce tile_oh or tile the input along H.")
    return int(min(max(2 * est_bytes, 32 * 1024 * 1024), ceiling))


def basic_conv2d_nhwc(x_nhwc, weight_oihw, gamma, beta, running_mean, running_var, *,
                      padding=1, eps=1e-3, tile_oh=None, compute_dtype=jnp.bfloat16,
                      out_dtype=None):
    """BasicConv2d forward (stride=1), NHWC in / NHWC out.

    x_nhwc: (N, H, W, C);  weight_oihw: (OC, C, KH, KW) (PyTorch layout).
    """
    n, h, w, c = x_nhwc.shape
    oc, wc, kh_sz, kw_sz = weight_oihw.shape
    assert wc == c
    oh = h + 2 * padding - kh_sz + 1           # stride = 1
    ow = w + 2 * padding - kw_sz + 1
    h_pad = h + 2 * padding
    kwc = kw_sz * c
    # Lane-dense OC padding only when OC is large; small-OC layers keep the true OC.
    oc_p = oc if oc < 128 else _round_up(oc, 128)
    out_dtype = x_nhwc.dtype if out_dtype is None else out_dtype

    if tile_oh is None:
        tile_oh = _choose_tile_oh(oh, ow, oc_p)
    assert oh % tile_oh == 0
    assert (tile_oh * ow) % 8 == 0 or tile_oh == oh
    tile_rows = tile_oh * ow
    n_tiles = oh // tile_oh

    # ---- glue (fused XLA): cast + spatial zero-pad + KW-shift pack into row matrix ----
    xp = jnp.pad(x_nhwc.astype(compute_dtype),
                 ((0, 0), (padding, padding), (padding, padding), (0, 0)))
    xp = jnp.concatenate([xp[:, :, j:j + ow, :] for j in range(kw_sz)], axis=-1)
    xp = xp.reshape(n, h_pad * ow, kwc)        # (N, H_pad*OW, KW*C)

    # ---- BN folding: scale into weights (f32), bias kept separate ----
    scale = gamma.astype(jnp.float32) * jax.lax.rsqrt(running_var.astype(jnp.float32) + eps)
    bias = beta.astype(jnp.float32) - running_mean.astype(jnp.float32) * scale
    w_f32 = jnp.transpose(weight_oihw, (2, 3, 1, 0)).astype(jnp.float32) * scale  # (KH,KW,C,OC)
    w_pk = w_f32.astype(compute_dtype).reshape(kh_sz, kwc, oc)
    if oc_p != oc:
        w_pk = jnp.pad(w_pk, ((0, 0), (0, 0), (0, oc_p - oc)))
        bias = jnp.pad(bias, (0, oc_p - oc))
    bias = bias.reshape(1, oc_p)

    # ---- VMEM budget (generation-aware) ----
    itm = jnp.dtype(compute_dtype).itemsize
    out_itm = jnp.dtype(out_dtype).itemsize
    est = (2 * h_pad * ow * kwc * itm            # packed per-sample input (dbl-buffered over N)
           + 2 * kh_sz * kwc * oc_p * itm        # weights (counted double-buffered, worst case)
           + 2 * tile_rows * oc_p * out_itm      # output tile (double-buffered)
           + 2 * oc_p * 4                        # bias
           + tile_rows * oc_p * 4)               # accumulator spill headroom
    vmem_limit = _vmem_limit_bytes(est)

    kernel = functools.partial(_conv_bn_relu_kernel, tile_oh=tile_oh, ow=ow, kh_sz=kh_sz)

    # TODO(synk): if xprof shows the whole-sample input DMA exposed at batch boundaries,
    #             tile the H axis of the input with halo blocks instead of full residency.
    out = pl.pallas_call(
        kernel,
        out_shape=jax.ShapeDtypeStruct((n, oh * ow, oc_p), out_dtype),
        grid_spec=pltpu.PrefetchScalarGridSpec(
            num_scalar_prefetch=0,
            grid=(n, n_tiles),
            in_specs=[
                # per-sample packed input: index_map ignores the tile axis -> one DMA / sample
                pl.BlockSpec((None, h_pad * ow, kwc), lambda b, i: (b, 0, 0)),
                # weights / BN bias: constant index_map -> DMA'd once, stay resident
                pl.BlockSpec((kh_sz, kwc, oc_p), lambda b, i: (0, 0, 0)),
                pl.BlockSpec((1, oc_p), lambda b, i: (0, 0)),
            ],
            out_specs=pl.BlockSpec((None, tile_rows, oc_p), lambda b, i: (b, i, 0)),
        ),
        compiler_params=pltpu.CompilerParams(
            dimension_semantics=("parallel", "parallel"),
            vmem_limit_bytes=vmem_limit,
        ),
    )(xp, w_pk, bias)

    out = out.reshape(n, oh, ow, oc_p)
    if oc_p != oc:
        out = out[..., :oc]
    return out


def basic_conv2d(x_nchw, weight_oihw, gamma, beta, running_mean, running_var, **kwargs):
    """PyTorch-facing NCHW wrapper. For chained convs prefer basic_conv2d_nhwc directly."""
    y = basic_conv2d_nhwc(jnp.transpose(x_nchw, (0, 2, 3, 1)), weight_oihw,
                          gamma, beta, running_mean, running_var, **kwargs)
    return jnp.transpose(y, (0, 3, 1, 2))


if __name__ == "__main__":
    key = jax.random.PRNGKey(0)
    k_x, k_w = jax.random.split(key)

    # BasicConv2d(in_channels=4, out_channels=8, kernel_size=3, stride=1, padding=1).
    N, C, H, W = 2, 4, 16, 16
    OC, KH, KW = 8, 3, 3

    x = jax.random.normal(k_x, (N, C, H, W), dtype=jnp.float32)
    weight = jax.random.normal(k_w, (OC, C, KH, KW), dtype=jnp.float32) * 0.1

    # Deterministic BatchNorm parameters (non-trivial but fixed).
    gamma = 1.0 + 0.01 * jnp.arange(OC, dtype=jnp.float32)
    beta = 0.05 * jnp.arange(OC, dtype=jnp.float32)
    running_mean = 0.02 * jnp.arange(OC, dtype=jnp.float32)
    running_var = 1.0 + 0.03 * jnp.arange(OC, dtype=jnp.float32)

    # tile_oh=8 -> grid (N=2, 2 OH-tiles): exercises the multi-tile path.
    fwd = jax.jit(functools.partial(basic_conv2d, padding=1, eps=1e-3, tile_oh=8))
    y = fwd(x, weight, gamma, beta, running_mean, running_var)
    jax.block_until_ready(y)
    assert y.shape == (N, OC, H, W)
    assert bool(jnp.all(jnp.isfinite(y)))

    # Pure-JAX f32 reference: conv (cross-correlation) -> inference BN -> ReLU.
    xr = jnp.transpose(x, (0, 2, 3, 1))
    wr = jnp.transpose(weight, (2, 3, 1, 0))
    ref = jax.lax.conv_general_dilated(
        xr, wr, window_strides=(1, 1), padding=((1, 1), (1, 1)),
        dimension_numbers=("NHWC", "HWIO", "NHWC"))
    scale_ref = gamma / jnp.sqrt(running_var + 1e-3)
    ref = jnp.maximum(ref * scale_ref + (beta - running_mean * scale_ref), 0.0)
    ref = jnp.transpose(ref, (0, 3, 1, 2))
    assert bool(jnp.allclose(y, ref, atol=5e-2, rtol=5e-2)), \
        float(jnp.max(jnp.abs(y - ref)))

    print("KERNEL_OK")
</pallas_src>

<mosaic_0001>
module attributes {stable_mosaic.version = 11 : i64} {
  func.func @_conv_bn_relu_kernel(%arg0: i32, %arg1: i32, %arg2: memref<1x288x12xbf16, #tpu.memory_space<vmem>>, %arg3: memref<3x12x8xbf16, #tpu.memory_space<vmem>>, %arg4: memref<1x8xf32, #tpu.memory_space<vmem>>, %arg5: memref<1x128x8xf32, #tpu.memory_space<vmem>>) attributes {dimension_semantics = [#tpu.dimension_semantics<parallel>, #tpu.dimension_semantics<parallel>], iteration_bounds = array<i64: 2, 2>, scalar_prefetch = 0 : i64, scratch_operands = 0 : i64, tpu.core_type = #tpu.core_type<tc>, window_params = [{transform_indices = @transform_0, window_bounds = array<i64: 1, 288, 12>}, {pipeline_mode = #tpu.pipeline_mode<synchronous>, transform_indices = @transform_1, window_bounds = array<i64: 3, 12, 8>}, {pipeline_mode = #tpu.pipeline_mode<synchronous>, transform_indices = @transform_2, window_bounds = array<i64: 1, 8>}, {transform_indices = @transform_3, window_bounds = array<i64: 1, 128, 8>}]} {
    %c128_i32 = arith.constant 128 : i32
    %0 = arith.muli %arg1, %c128_i32 : i32
    %c0_i32 = arith.constant 0 : i32
    %1 = arith.addi %0, %c0_i32 : i32
    %2 = tpu.assume_multiple %1, 8 : i32
    %c0 = arith.constant 0 : index
    %3 = arith.index_cast %2 : i32 to index
    %c0_0 = arith.constant 0 : index
    %4 = vector.load %arg2[%c0, %3, %c0_0] : memref<1x288x12xbf16, #tpu.memory_space<vmem>>, vector<1x128x12xbf16>
    %5 = vector.shape_cast %4 : vector<1x128x12xbf16> to vector<128x12xbf16>
    %c0_1 = arith.constant 0 : index
    %c0_2 = arith.constant 0 : index
    %c0_3 = arith.constant 0 : index
    %6 = vector.load %arg3[%c0_1, %c0_2, %c0_3] : memref<3x12x8xbf16, #tpu.memory_space<vmem>>, vector<1x12x8xbf16>
    %7 = vector.shape_cast %6 : vector<1x12x8xbf16> to vector<12x8xbf16>
    %cst = arith.constant dense<0.000000e+00> : vector<128x8xf32>
    %8 = tpu.matmul %5, %7, %cst {dimension_numbers = #tpu.dot_dimension_numbers<[1], [0], [0], [1], [0, 0, 1, 1], [], []>} : vector<128x12xbf16>, vector<12x8xbf16>, vector<128x8xf32> -> vector<128x8xf32>
    %c16_i32 = arith.constant 16 : i32
    %9 = arith.addi %0, %c16_i32 : i32
    %10 = tpu.assume_multiple %9, 8 : i32
    %c0_4 = arith.constant 0 : index
    %11 = arith.index_cast %10 : i32 to index
    %c0_5 = arith.constant 0 : index
    %12 = vector.load %arg2[%c0_4, %11, %c0_5] : memref<1x288x12xbf16, #tpu.memory_space<vmem>>, vector<1x128x12xbf16>
    %13 = vector.shape_cast %12 : vector<1x128x12xbf16> to vector<128x12xbf16>
    %c1 = arith.constant 1 : index
    %c0_6 = arith.constant 0 : index
    %c0_7 = arith.constant 0 : index
    %14 = vector.load %arg3[%c1, %c0_6, %c0_7] : memref<3x12x8xbf16, #tpu.memory_space<vmem>>, vector<1x12x8xbf16>
    %15 = vector.shape_cast %14 : vector<1x12x8xbf16> to vector<12x8xbf16>
    %cst_8 = arith.constant dense<0.000000e+00> : vector<128x8xf32>
    %16 = tpu.matmul %13, %15, %cst_8 {dimension_numbers = #tpu.dot_dimension_numbers<[1], [0], [0], [1], [0, 0, 1, 1], [], []>} : vector<128x12xbf16>, vector<12x8xbf16>, vector<128x8xf32> -> vector<128x8xf32>
    %17 = arith.addf %8, %16 : vector<128x8xf32>
    %c32_i32 = arith.constant 32 : i32
    %18 = arith.addi %0, %c32_i32 : i32
    %19 = tpu.assume_multiple %18, 8 : i32
    %c0_9 = arith.constant 0 : index
    %20 = arith.index_cast %19 : i32 to index
    %c0_10 = arith.constant 0 : index
    %21 = vector.load %arg2[%c0_9, %20, %c0_10] : memref<1x288x12xbf16, #tpu.memory_space<vmem>>, vector<1x128x12xbf16>
    %22 = vector.shape_cast %21 : vector<1x128x12xbf16> to vector<128x12xbf16>
    %c2 = arith.constant 2 : index
    %c0_11 = arith.constant 0 : index
    %c0_12 = arith.constant 0 : index
    %23 = vector.load %arg3[%c2, %c0_11, %c0_12] : memref<3x12x8xbf16, #tpu.memory_space<vmem>>, vector<1x12x8xbf16>
    %24 = vector.shape_cast %23 : vector<1x12x8xbf16> to vector<12x8xbf16>
    %cst_13 = arith.constant dense<0.000000e+00> : vector<128x8xf32>
    %25 = tpu.matmul %22, %24, %cst_13 {dimension_numbers = #tpu.dot_dimension_numbers<[1], [0], [0], [1], [0, 0, 1, 1], [], []>} : vector<128x12xbf16>, vector<12x8xbf16>, vector<128x8xf32> -> vector<128x8xf32>
    %26 = arith.addf %17, %25 : vector<128x8xf32>
    %c0_14 = arith.constant 0 : index
    %c0_15 = arith.constant 0 : index
    %27 = vector.load %arg4[%c0_14, %c0_15] : memref<1x8xf32, #tpu.memory_space<vmem>>, vector<1x8xf32>
    %28 = vector.broadcast %27 : vector<1x8xf32> to vector<128x8xf32>
    %29 = arith.addf %26, %28 : vector<128x8xf32>
    %cst_16 = arith.constant 0.000000e+00 : f32
    %30 = vector.broadcast %cst_16 : f32 to vector<128x8xf32>
    %31 = arith.maximumf %29, %30 : vector<128x8xf32>
    %c0_17 = arith.constant 0 : index
    %c0_18 = arith.constant 0 : index
    %c0_19 = arith.constant 0 : index
    %32 = vector.load %arg5[%c0_17, %c0_18, %c0_19] : memref<1x128x8xf32, #tpu.memory_space<vmem>>, vector<1x128x8xf32>
    %33 = vector.shape_cast %32 : vector<1x128x8xf32> to vector<128x8xf32>
    %34 = vector.shape_cast %31 : vector<128x8xf32> to vector<1x128x8xf32>
    tpu.vector_store %arg5[%c0_17, %c0_18, %c0_19], %34 {strides = array<i32>} : memref<1x128x8xf32, #tpu.memory_space<vmem>>, vector<1x128x8xf32>,
    return
  }
  func.func @transform_0(%arg0: i32, %arg1: i32) -> (i32, i32, i32) {
    %c0_i32 = arith.constant 0 : i32
    %c0_i32_0 = arith.constant 0 : i32
    %c0_i32_1 = arith.constant 0 : i32
    return %arg0, %c0_i32, %c0_i32_0 : i32, i32, i32
  }
  func.func @transform_1(%arg0: i32, %arg1: i32) -> (i32, i32, i32) {
    %c0_i32 = arith.constant 0 : i32
    %c0_i32_0 = arith.constant 0 : i32
    %c0_i32_1 = arith.constant 0 : i32
    %c0_i32_2 = arith.constant 0 : i32
    return %c0_i32, %c0_i32_0, %c0_i32_1 : i32, i32, i32
  }
  func.func @transform_2(%arg0: i32, %arg1: i32) -> (i32, i32) {
    %c0_i32 = arith.constant 0 : i32
    %c0_i32_0 = arith.constant 0 : i32
    %c0_i32_1 = arith.constant 0 : i32
    return %c0_i32, %c0_i32_0 : i32, i32
  }
  func.func @transform_3(%arg0: i32, %arg1: i32) -> (i32, i32, i32) {
    %c0_i32 = arith.constant 0 : i32
    %c0_i32_0 = arith.constant 0 : i32
    return %arg0, %arg1, %c0_i32 : i32, i32, i32
  }
}

</mosaic_0001>

<llo_original>
// kernel: basic_conv2d.1
$region0: #{basic_conv2d.1}
  #allocation0 [shape = 'u32[]', space=smem, size = 0x4, offset = 0x4, fixed_abs, tag = 'smem constant byte address 0x4 - core index']
  #allocation1 [shape = 'u32[72,128]{1,0:T(1,128)}', space=vmem, size = 0x9000, scoped, tag = 'internal scratch']
  %s0 = inlined_call_operand.vmem [shape: bf16[2,288,12], index: 0, kind: input, shape index: {}]
  %s1 = inlined_call_operand.vmem [shape: bf16[3,12,8], index: 1, kind: input, shape index: {}]
  %s2 = inlined_call_operand.vmem [shape: f32[1,8], index: 2, kind: input, shape index: {}]
  %s3 = inlined_call_operand.vmem [shape: f32[2,256,8], index: 3, kind: output, shape index: {}]
  %s4 = sld [smem:[#allocation0]]
  $region45: #{basic_conv2d.1} parent=0
    _
  %s6 = ssub.s32 1, %s4
  %s7 = scalar_select 0, %s6, %s4
  loop: start=0, step=1, limit=6
  $region2: #{basic_conv2d.1} parent=0 // loop_pre_header
    _
  $region3: #{basic_conv2d.1} parent=0 // loop_header
    %s9 = sphi 0, %s13
    %p10 = scmp.ge.s32.totalorder %s9, 6
    %s16 = sphi 0, %s28
    %s17 = sphi 0, %s24
    %s18 = sphi 0, %s16
    %s19 = sphi 0, %s17
    %s20 = sphi 0, %s18
    %s21 = sphi 0, %s19
    %s31 = sphi 0, %s33
    %s34 = sphi 0, %s31
    %s35 = sphi 0, %s34
    %s51 = sphi 0, %s35
    %s55 = sphi 0, %s55
    %s57 = sphi 0, %s55
    %s58 = sphi 0, %s57
    %s72 = sphi 0, %s58
    %s76 = sphi 0, %s76
    %s78 = sphi 0, %s76
    %s79 = sphi 0, %s78
    %s93 = sphi 0, %s79
    %s101 = sphi 0, %s103
    %s104 = sphi 0, %s101
    %s105 = sphi 0, %s104
    %s121 = sphi 0, %s105
  $region4: #{basic_conv2d.1} parent=0 // loop_header_branch
    %12 = sbr.rel (%p10) target = $region8
  $region5: #{basic_conv2d.1} parent=0 // loop_body
    %s14 = ssub.s32 %s9, 1
    %s15 = ssub.s32 %s9, 2
    %s22 = sadd.s32 1, %s17
    %p23 = scmp.ge.s32.totalorder %s22, 2
    %s24 = scalar_select %p23, 0, %s22
    %s25 = sadd.s32 1, %s16
    %s26 = scalar_select %p23, %s25, %s16
    %p27 = scmp.ge.s32.totalorder %s26, 2
    %s28 = scalar_select %p27, 0, %s26
    %s29 = ssub.s32 %s16, %s28
    %p30 = scmp.eq.s32.totalorder %s29, 0
    %s32 = sadd.s32 %s31, 1
    %s33 = scalar_select %p30, %s31, %s32
    %p36 = pneg %p30
    %p37 = scmp.eq.s32.totalorder %s9, 3
    %p38 = por %p36, %p37
    %p39 = scmp.ne.s32.totalorder %s31, %s34
    %p40 = scmp.eq.s32.totalorder %s9, 0
    %p41 = por %p39, %p40
    %p42 = scmp.ne.s32.totalorder %s31, %s34
    %p43 = scmp.eq.s32.totalorder %s14, 3
    %p44 = por %p42, %p43
    %p45 = scmp.ne.s32.totalorder %s34, %s35
    %p46 = scmp.eq.s32.totalorder %s14, 0
    %p47 = por %p45, %p46
    %p48 = scmp.ne.s32.totalorder %s34, %s35
    %p49 = scmp.eq.s32.totalorder %s15, 3
    %p50 = por %p48, %p49
    %p52 = scmp.ne.s32.totalorder %s35, %s51
    %p53 = scmp.eq.s32.totalorder %s15, 0
    %p54 = por %p52, %p53
    %s56 = sadd.s32 %s55, 1
    %p59 = scmp.eq.s32.totalorder %s9, 3
    %p60 = scmp.ne.s32.totalorder %s55, %s57
    %p61 = scmp.eq.s32.totalorder %s9, 0
    %p62 = por %p60, %p61
    %p63 = scmp.ne.s32.totalorder %s55, %s57
    %p64 = scmp.eq.s32.totalorder %s14, 3
    %p65 = por %p63, %p64
    %p66 = scmp.ne.s32.totalorder %s57, %s58
    %p67 = scmp.eq.s32.totalorder %s14, 0
    %p68 = por %p66, %p67
    %p69 = scmp.ne.s32.totalorder %s57, %s58
    %p70 = scmp.eq.s32.totalorder %s15, 3
    %p71 = por %p69, %p70
    %p73 = scmp.ne.s32.totalorder %s58, %s72
    %p74 = scmp.eq.s32.totalorder %s15, 0
    %p75 = por %p73, %p74
    %s77 = sadd.s32 %s76, 1
    %p80 = scmp.eq.s32.totalorder %s9, 3
    %p81 = scmp.ne.s32.totalorder %s76, %s78
    %p82 = scmp.eq.s32.totalorder %s9, 0
    %p83 = por %p81, %p82
    %p84 = scmp.ne.s32.totalorder %s76, %s78
    %p85 = scmp.eq.s32.totalorder %s14, 3
    %p86 = por %p84, %p85
    %p87 = scmp.ne.s32.totalorder %s78, %s79
    %p88 = scmp.eq.s32.totalorder %s14, 0
    %p89 = por %p87, %p88
    %p90 = scmp.ne.s32.totalorder %s78, %s79
    %p91 = scmp.eq.s32.totalorder %s15, 3
    %p92 = por %p90, %p91
    %p94 = scmp.ne.s32.totalorder %s79, %s93
    %p95 = scmp.eq.s32.totalorder %s15, 0
    %p96 = por %p94, %p95
    %s97 = ssub.s32 %s16, %s28
    %s98 = ssub.s32 %s17, %s24
    %s99 = sor.u32 %s97, %s98
    %p100 = scmp.eq.s32.totalorder %s99, 0
    %s102 = sadd.s32 %s101, 1
    %s103 = scalar_select %p100, %s101, %s102
    %p106 = pneg %p100
    %p107 = scmp.eq.s32.totalorder %s9, 3
    %p108 = por %p106, %p107
    %p109 = scmp.ne.s32.totalorder %s101, %s104
    %p110 = scmp.eq.s32.totalorder %s9, 0
    %p111 = por %p109, %p110
    %p112 = scmp.ne.s32.totalorder %s101, %s104
    %p113 = scmp.eq.s32.totalorder %s14, 3
    %p114 = por %p112, %p113
    %p115 = scmp.ne.s32.totalorder %s104, %s105
    %p116 = scmp.eq.s32.totalorder %s14, 0
    %p117 = por %p115, %p116
    %p118 = scmp.ne.s32.totalorder %s104, %s105
    %p119 = scmp.eq.s32.totalorder %s15, 3
    %p120 = por %p118, %p119
    %p122 = scmp.ne.s32.totalorder %s105, %s121
    %p123 = scmp.eq.s32.totalorder %s15, 0
    %p124 = por %p122, %p123
    %p125 = scmp.le.s32.totalorder 1, %s9
    %p126 = scmp.lt.s32.totalorder %s9, 5
    %p127 = pnand %p125, %p126
    %p128 = pneg %p127
    // Predicated region
    $region9: #{basic_conv2d.1} parent=5 // pred_check
      _
    $region10: #{basic_conv2d.1} parent=5 // pred_check_branch
      %130 = sbr.rel (%p127) target = $region12
    $region11: #{basic_conv2d.1} parent=5 // pred_region
      %s131 = ssub.s32 %s9, 1
      // Predicated region
      $region13: #{basic_conv2d.1} parent=11 // pred_check
        %p132 = pneg %p68
      $region14: #{basic_conv2d.1} parent=11 // pred_check_branch
        %134 = sbr.rel (%p132) target = $region16
      $region15: #{basic_conv2d.1} parent=11 // pred_region
        _
      $region16: #{basic_conv2d.1} parent=11 // pred_fallthru
        _
      // Predicated region
      $region17: #{basic_conv2d.1} parent=11 // pred_check
        %p135 = pneg %p89
      $region18: #{basic_conv2d.1} parent=11 // pred_check_branch
        %137 = sbr.rel (%p135) target = $region20
      $region19: #{basic_conv2d.1} parent=11 // pred_region
        _
      $region20: #{basic_conv2d.1} parent=11 // pred_fallthru
        _
    $region12: #{basic_conv2d.1} parent=5 // pred_fallthru
      _
    %p138 = scmp.lt.s32.totalorder %s9, 4
    // Predicated region
    $region21: #{basic_conv2d.1} parent=5 // pred_check
      %p139 = pneg %p138
    $region22: #{basic_conv2d.1} parent=5 // pred_check_branch
      %141 = sbr.rel (%p139) target = $region24
    $region23: #{basic_conv2d.1} parent=5 // pred_region
      // Predicated region
      $region25: #{basic_conv2d.1} parent=23 // pred_check
        %p142 = pneg %p41
      $region26: #{basic_conv2d.1} parent=23 // pred_check_branch
        %144 = sbr.rel (%p142) target = $region28
      $region27: #{basic_conv2d.1} parent=23 // pred_region
        %p145 = scmp.lt.s32.totalorder %s16, 1
        %s146 = scalar_select %p145, %s16, 1
        %s147 = smul.addr %s146, 36
        %s148 = smul.addr %s147, 4
        %s149 = scalar_lea.vmem %s0, %s148
      $region28: #{basic_conv2d.1} parent=23 // pred_fallthru
        _
    $region24: #{basic_conv2d.1} parent=5 // pred_fallthru
      _
    %p150 = scmp.le.s32.totalorder 1, %s9
    %p151 = scmp.lt.s32.totalorder %s9, 5
    %p152 = pnand %p150, %p151
    %p153 = pneg %p152
    // Predicated region
    $region29: #{basic_conv2d.1} parent=5 // pred_check
      _
    $region30: #{basic_conv2d.1} parent=5 // pred_check_branch
      %155 = sbr.rel (%p152) target = $region32
    $region31: #{basic_conv2d.1} parent=5 // pred_region
      %s156 = ssub.s32 %s9, 1
      %p157 = scmp.lt.s32.totalorder %s18, 1
      %s158 = scalar_select %p157, %s18, 1
      %s159 = smul.addr %s158, 36
      %s160 = smul.addr %s159, 4
      %s161 = scalar_lea.vmem %s0, %s160
      %p162 = pneg %p47
      %p163 = pneg %p44
      %p164 = pneg %p68
      %p165 = pneg %p65
      %p166 = pneg %p89
      %p167 = pneg %p86
      %p168 = pneg %p117
      %p169 = pneg %p114
      %s170 = smul.u32 16, %s19
      %p171 = scmp.lt.s32.totalorder %s18, 1
      %s172 = scalar_select %p171, %s18, 1
      %p173 = scmp.lt.s32.totalorder %s170, 31
      %s174 = scalar_select %p173, %s170, 31
      %s175 = smul.addr %s172, 32
      %s176 = sadd.s32 %s174, %s175
      %s177 = smul.addr %s176, 8
      %s178 = scalar_lea.vmem %s3, %s177
      %p179 = scmp.lt.s32.totalorder %s18, 1
      %s180 = scalar_select %p179, %s18, 1
      %s181 = smul.addr %s180, 36
      %s182 = smul.addr %s181, 4
      %s183 = scalar_lea.vmem %s0, %s182
      %s184 = smul.u32 16, %s19
      %p185 = scmp.lt.s32.totalorder %s18, 1
      %s186 = scalar_select %p185, %s18, 1
      %p187 = scmp.lt.s32.totalorder %s184, 31
      %s188 = scalar_select %p187, %s184, 31
      %s189 = smul.addr %s186, 32
      %s190 = sadd.s32 %s188, %s189
      %s191 = smul.addr %s190, 8
      %s192 = scalar_lea.vmem %s3, %s191
      %s193 = smul.u32 16, %s19
      %s195 = smul.u32 %s19, 128
      %s196 = sshra.s32 %s195, 3
      %s197 = sand.u32 %s195, 7
      %s198 = smul.addr %s196, 4
      %s199 = scalar_lea.vmem %s183, %s198
      %v200 = vld [vmem:[%s199] sm:$0xf]
      %v201 = vld [vmem:[%s199 + $0x4] sm:$0xf]
      %v202 = vld [vmem:[%s199 + $0x8] sm:$0xf]
      %v203 = vld [vmem:[%s199 + $0xc] sm:$0xf]
      %v204 = vld [vmem:[%s199 + $0x10] sm:$0xf]
      %v205 = vld [vmem:[%s199 + $0x14] sm:$0xf]
      %v206 = vld [vmem:[%s199 + $0x18] sm:$0xf]
      %v207 = vld [vmem:[%s199 + $0x1c] sm:$0xf]
      %v208 = vld [vmem:[%s199 + $0x20] sm:$0xf]
      %v209 = vld [vmem:[%s199 + $0x24] sm:$0xf]
      %v210 = vld [vmem:[%s199 + $0x28] sm:$0xf]
      %v211 = vld [vmem:[%s199 + $0x2c] sm:$0xf]
      %v212 = vld [vmem:[%s199 + $0x30] sm:$0xf]
      %v213 = vld [vmem:[%s199 + $0x34] sm:$0xf]
      %v214 = vld [vmem:[%s199 + $0x38] sm:$0xf]
      %v215 = vld [vmem:[%s199 + $0x3c] sm:$0xf]
      %v216 = vld [vmem:[%s1] sm:$0xf]
      %v217 = vld [vmem:[%s1 + $0x4] sm:$0x3]
      %s218 = sadd.s32 %s195, 16
      %s219 = sshra.s32 %s218, 3
      %s220 = sand.u32 %s218, 7
      %s221 = smul.addr %s219, 4
      %s222 = scalar_lea.vmem %s183, %s221
      %v223 = vld [vmem:[%s222] sm:$0xf]
      %v224 = vld [vmem:[%s222 + $0x4] sm:$0xf]
      %v225 = vld [vmem:[%s222 + $0x8] sm:$0xf]
      %v226 = vld [vmem:[%s222 + $0xc] sm:$0xf]
      %v227 = vld [vmem:[%s222 + $0x10] sm:$0xf]
      %v228 = vld [vmem:[%s222 + $0x14] sm:$0xf]
      %v229 = vld [vmem:[%s222 + $0x18] sm:$0xf]
      %v230 = vld [vmem:[%s222 + $0x1c] sm:$0xf]
      %v231 = vld [vmem:[%s222 + $0x20] sm:$0xf]
      %v232 = vld [vmem:[%s222 + $0x24] sm:$0xf]
      %v233 = vld [vmem:[%s222 + $0x28] sm:$0xf]
      %v234 = vld [vmem:[%s222 + $0x2c] sm:$0xf]
      %v235 = vld [vmem:[%s222 + $0x30] sm:$0xf]
      %v236 = vld [vmem:[%s222 + $0x34] sm:$0xf]
      %v237 = vld [vmem:[%s222 + $0x38] sm:$0xf]
      %v238 = vld [vmem:[%s222 + $0x3c] sm:$0xf]
      %s239 = scalar_lea.vmem %s1, 8
      %v240 = vld [vmem:[%s239] sm:$0xf]
      %v241 = vld [vmem:[%s239 + $0x4] sm:$0x3]
      %v258 = vunpack.c.l.b16 %v223
      %v259 = vunpack.c.l.b16 %v224
      %v260 = vunpack.c.l.b16 %v225
      %v261 = vunpack.c.l.b16 %v226
      %v262 = vunpack.c.l.b16 %v227
      %v263 = vunpack.c.l.b16 %v228
      %v264 = vunpack.c.l.b16 %v229
      %v265 = vunpack.c.l.b16 %v230
      %v266 = vunpack.c.l.b16 %v231
      %v267 = vunpack.c.l.b16 %v232
      %v268 = vunpack.c.l.b16 %v233
      %v269 = vunpack.c.l.b16 %v234
      %v270 = vunpack.c.l.b16 %v235
      %v271 = vunpack.c.l.b16 %v236
      %v272 = vunpack.c.l.b16 %v237
      %v273 = vunpack.c.l.b16 %v238
      %v274 = vpack.c.b16 %v259, %v258
      %v275 = vpack.c.b16 %v261, %v260
      %v276 = vpack.c.b16 %v263, %v262
      %v277 = vpack.c.b16 %v265, %v264
      %v278 = vpack.c.b16 %v267, %v266
      %v279 = vpack.c.b16 %v269, %v268
      %v280 = vpack.c.b16 %v271, %v270
      %v281 = vpack.c.b16 %v273, %v272
      %v284 = vunpack.c.l.b16 %v240
      %v285 = vunpack.c.l.b16 %v241
      %v286 = vpack.c.b16 %v285, %v284
      %vm287 = vcmask 97280
      %v289 = vsel %vm287, %v274, 0
      %v292 = vsel %vm287, %v275, 0
      %v295 = vsel %vm287, %v276, 0
      %v298 = vsel %vm287, %v277, 0
      %v301 = vsel %vm287, %v278, 0
      %v304 = vsel %vm287, %v279, 0
      %v307 = vsel %vm287, %v280, 0
      %v310 = vsel %vm287, %v281, 0
      %vm312 = vcmask 1045504
      %v314 = vsel %vm312, %v286, 0
      %316 = vmatpush.bf16.msra.mxu0 0
      %317 = vmatpush.bf16.msra.mxu0 0
      %318 = vmatpush.bf16.msra.mxu0 0
      %319 = vmatpush.bf16.msra.mxu0 0
      %320 = vmatpush.bf16.msra.mxu0 0
      %321 = vmatpush.bf16.msra.mxu0 0
      %322 = vmatpush.bf16.msra.mxu0 0
      %323 = vmatpush.bf16.msra.mxu0 %v314
      %324 = vmatmul.bf16.gmra.mxu0 %v289
      %v325 = vpop.f32.mrf.mxu0
      %v326 = vadd.f32 0.0, %v325
      %v327 = vpop.f32.mrf.mxu0
      %v328 = vadd.f32 0.0, %v327
      %329 = vmatmul.bf16.gmra.mxu0 %v292
      %v330 = vpop.f32.mrf.mxu0
      %v331 = vadd.f32 0.0, %v330
      %v332 = vpop.f32.mrf.mxu0
      %v333 = vadd.f32 0.0, %v332
      %334 = vmatmul.bf16.gmra.mxu0 %v295
      %v335 = vpop.f32.mrf.mxu0
      %v336 = vadd.f32 0.0, %v335
      %v337 = vpop.f32.mrf.mxu0
      %v338 = vadd.f32 0.0, %v337
      %339 = vmatmul.bf16.gmra.mxu0 %v298
      %v340 = vpop.f32.mrf.mxu0
      %v341 = vadd.f32 0.0, %v340
      %v342 = vpop.f32.mrf.mxu0
      %v343 = vadd.f32 0.0, %v342
      %344 = vmatmul.bf16.gmra.mxu0 %v301
      %v345 = vpop.f32.mrf.mxu0
      %v346 = vadd.f32 0.0, %v345
      %v347 = vpop.f32.mrf.mxu0
      %v348 = vadd.f32 0.0, %v347
      %349 = vmatmul.bf16.gmra.mxu0 %v304
      %v350 = vpop.f32.mrf.mxu0
      %v351 = vadd.f32 0.0, %v350
      %v352 = vpop.f32.mrf.mxu0
      %v353 = vadd.f32 0.0, %v352
      %354 = vmatmul.bf16.gmra.mxu0 %v307
      %v355 = vpop.f32.mrf.mxu0
      %v356 = vadd.f32 0.0, %v355
      %v357 = vpop.f32.mrf.mxu0
      %v358 = vadd.f32 0.0, %v357
      %359 = vmatmul.bf16.gmra.mxu0 %v310
      %v360 = vpop.f32.mrf.mxu0
      %v361 = vadd.f32 0.0, %v360
      %v362 = vpop.f32.mrf.mxu0
      %v363 = vadd.f32 0.0, %v362
      %364 = vdwg.mxu0
      %v381 = vunpack.c.l.b16 %v200
      %v382 = vunpack.c.l.b16 %v201
      %v383 = vunpack.c.l.b16 %v202
      %v384 = vunpack.c.l.b16 %v203
      %v385 = vunpack.c.l.b16 %v204
      %v386 = vunpack.c.l.b16 %v205
      %v387 = vunpack.c.l.b16 %v206
      %v388 = vunpack.c.l.b16 %v207
      %v389 = vunpack.c.l.b16 %v208
      %v390 = vunpack.c.l.b16 %v209
      %v391 = vunpack.c.l.b16 %v210
      %v392 = vunpack.c.l.b16 %v211
      %v393 = vunpack.c.l.b16 %v212
      %v394 = vunpack.c.l.b16 %v213
      %v395 = vunpack.c.l.b16 %v214
      %v396 = vunpack.c.l.b16 %v215
      %v397 = vpack.c.b16 %v382, %v381
      %v398 = vpack.c.b16 %v384, %v383
      %v399 = vpack.c.b16 %v386, %v385
      %v400 = vpack.c.b16 %v388, %v387
      %v401 = vpack.c.b16 %v390, %v389
      %v402 = vpack.c.b16 %v392, %v391
      %v403 = vpack.c.b16 %v394, %v393
      %v404 = vpack.c.b16 %v396, %v395
      %v407 = vunpack.c.l.b16 %v216
      %v408 = vunpack.c.l.b16 %v217
      %v409 = vpack.c.b16 %v408, %v407
      %v411 = vsel %vm287, %v397, 0
      %v414 = vsel %vm287, %v398, 0
      %v417 = vsel %vm287, %v399, 0
      %v420 = vsel %vm287, %v400, 0
      %v423 = vsel %vm287, %v401, 0
      %v426 = vsel %vm287, %v402, 0
      %v429 = vsel %vm287, %v403, 0
      %v432 = vsel %vm287, %v404, 0
      %v435 = vsel %vm312, %v409, 0
      %437 = vmatpush.bf16.msra.mxu0 0
      %438 = vmatpush.bf16.msra.mxu0 0
      %439 = vmatpush.bf16.msra.mxu0 0
      %440 = vmatpush.bf16.msra.mxu0 0
      %441 = vmatpush.bf16.msra.mxu0 0
      %442 = vmatpush.bf16.msra.mxu0 0
      %443 = vmatpush.bf16.msra.mxu0 0
      %444 = vmatpush.bf16.msra.mxu0 %v435
      %445 = vmatmul.bf16.gmra.mxu0 %v411
      %v446 = vpop.f32.mrf.mxu0
      %v447 = vadd.f32 %v326, %v446
      %v448 = vpop.f32.mrf.mxu0
      %v449 = vadd.f32 %v328, %v448
      %450 = vmatmul.bf16.gmra.mxu0 %v414
      %v451 = vpop.f32.mrf.mxu0
      %v452 = vadd.f32 %v331, %v451
      %v453 = vpop.f32.mrf.mxu0
      %v454 = vadd.f32 %v333, %v453
      %455 = vmatmul.bf16.gmra.mxu0 %v417
      %v456 = vpop.f32.mrf.mxu0
      %v457 = vadd.f32 %v336, %v456
      %v458 = vpop.f32.mrf.mxu0
      %v459 = vadd.f32 %v338, %v458
      %460 = vmatmul.bf16.gmra.mxu0 %v420
      %v461 = vpop.f32.mrf.mxu0
      %v462 = vadd.f32 %v341, %v461
      %v463 = vpop.f32.mrf.mxu0
      %v464 = vadd.f32 %v343, %v463
      %465 = vmatmul.bf16.gmra.mxu0 %v423
      %v466 = vpop.f32.mrf.mxu0
      %v467 = vadd.f32 %v346, %v466
      %v468 = vpop.f32.mrf.mxu0
      %v469 = vadd.f32 %v348, %v468
      %470 = vmatmul.bf16.gmra.mxu0 %v426
      %v471 = vpop.f32.mrf.mxu0
      %v472 = vadd.f32 %v351, %v471
      %v473 = vpop.f32.mrf.mxu0
      %v474 = vadd.f32 %v353, %v473
      %475 = vmatmul.bf16.gmra.mxu0 %v429
      %v476 = vpop.f32.mrf.mxu0
      %v477 = vadd.f32 %v356, %v476
      %v478 = vpop.f32.mrf.mxu0
      %v479 = vadd.f32 %v358, %v478
      %480 = vmatmul.bf16.gmra.mxu0 %v432
      %v481 = vpop.f32.mrf.mxu0
      %v482 = vadd.f32 %v361, %v481
      %v483 = vpop.f32.mrf.mxu0
      %v484 = vadd.f32 %v363, %v483
      %485 = vdwg.mxu0
      %s486 = sadd.s32 %s195, 32
      %s487 = sshra.s32 %s486, 3
      %s488 = sand.u32 %s486, 7
      %s489 = smul.addr %s487, 4
      %s490 = scalar_lea.vmem %s183, %s489
      %v491 = vld [vmem:[%s490] sm:$0xf]
      %v492 = vld [vmem:[%s490 + $0x4] sm:$0xf]
      %v493 = vld [vmem:[%s490 + $0x8] sm:$0xf]
      %v494 = vld [vmem:[%s490 + $0xc] sm:$0xf]
      %v495 = vld [vmem:[%s490 + $0x10] sm:$0xf]
      %v496 = vld [vmem:[%s490 + $0x14] sm:$0xf]
      %v497 = vld [vmem:[%s490 + $0x18] sm:$0xf]
      %v498 = vld [vmem:[%s490 + $0x1c] sm:$0xf]
      %v499 = vld [vmem:[%s490 + $0x20] sm:$0xf]
      %v500 = vld [vmem:[%s490 + $0x24] sm:$0xf]
      %v501 = vld [vmem:[%s490 + $0x28] sm:$0xf]
      %v502 = vld [vmem:[%s490 + $0x2c] sm:$0xf]
      %v503 = vld [vmem:[%s490 + $0x30] sm:$0xf]
      %v504 = vld [vmem:[%s490 + $0x34] sm:$0xf]
      %v505 = vld [vmem:[%s490 + $0x38] sm:$0xf]
      %v506 = vld [vmem:[%s490 + $0x3c] sm:$0xf]
      %s507 = scalar_lea.vmem %s1, 16
      %v508 = vld [vmem:[%s507] sm:$0xf]
      %v509 = vld [vmem:[%s507 + $0x4] sm:$0x3]
      %v526 = vunpack.c.l.b16 %v491
      %v527 = vunpack.c.l.b16 %v492
      %v528 = vunpack.c.l.b16 %v493
      %v529 = vunpack.c.l.b16 %v494
      %v530 = vunpack.c.l.b16 %v495
      %v531 = vunpack.c.l.b16 %v496
      %v532 = vunpack.c.l.b16 %v497
      %v533 = vunpack.c.l.b16 %v498
      %v534 = vunpack.c.l.b16 %v499
      %v535 = vunpack.c.l.b16 %v500
      %v536 = vunpack.c.l.b16 %v501
      %v537 = vunpack.c.l.b16 %v502
      %v538 = vunpack.c.l.b16 %v503
      %v539 = vunpack.c.l.b16 %v504
      %v540 = vunpack.c.l.b16 %v505
      %v541 = vunpack.c.l.b16 %v506
      %v542 = vpack.c.b16 %v527, %v526
      %v543 = vpack.c.b16 %v529, %v528
      %v544 = vpack.c.b16 %v531, %v530
      %v545 = vpack.c.b16 %v533, %v532
      %v546 = vpack.c.b16 %v535, %v534
      %v547 = vpack.c.b16 %v537, %v536
      %v548 = vpack.c.b16 %v539, %v538
      %v549 = vpack.c.b16 %v541, %v540
      %v552 = vunpack.c.l.b16 %v508
      %v553 = vunpack.c.l.b16 %v509
      %v554 = vpack.c.b16 %v553, %v552
      %v556 = vsel %vm287, %v542, 0
      %v559 = vsel %vm287, %v543, 0
      %v562 = vsel %vm287, %v544, 0
      %v565 = vsel %vm287, %v545, 0
      %v568 = vsel %vm287, %v546, 0
      %v571 = vsel %vm287, %v547, 0
      %v574 = vsel %vm287, %v548, 0
      %v577 = vsel %vm287, %v549, 0
      %v580 = vsel %vm312, %v554, 0
      %582 = vmatpush.bf16.msra.mxu0 0
      %583 = vmatpush.bf16.msra.mxu0 0
      %584 = vmatpush.bf16.msra.mxu0 0
      %585 = vmatpush.bf16.msra.mxu0 0
      %586 = vmatpush.bf16.msra.mxu0 0
      %587 = vmatpush.bf16.msra.mxu0 0
      %588 = vmatpush.bf16.msra.mxu0 0
      %589 = vmatpush.bf16.msra.mxu0 %v580
      %590 = vmatmul.bf16.gmra.mxu0 %v556
      %v591 = vpop.f32.mrf.mxu0
      %v592 = vadd.f32 0.0, %v591
      %v593 = vpop.f32.mrf.mxu0
      %v594 = vadd.f32 0.0, %v593
      %595 = vmatmul.bf16.gmra.mxu0 %v559
      %v596 = vpop.f32.mrf.mxu0
      %v597 = vadd.f32 0.0, %v596
      %v598 = vpop.f32.mrf.mxu0
      %v599 = vadd.f32 0.0, %v598
      %600 = vmatmul.bf16.gmra.mxu0 %v562
      %v601 = vpop.f32.mrf.mxu0
      %v602 = vadd.f32 0.0, %v601
      %v603 = vpop.f32.mrf.mxu0
      %v604 = vadd.f32 0.0, %v603
      %605 = vmatmul.bf16.gmra.mxu0 %v565
      %v606 = vpop.f32.mrf.mxu0
      %v607 = vadd.f32 0.0, %v606
      %v608 = vpop.f32.mrf.mxu0
      %v609 = vadd.f32 0.0, %v608
      %610 = vmatmul.bf16.gmra.mxu0 %v568
      %v611 = vpop.f32.mrf.mxu0
      %v612 = vadd.f32 0.0, %v611
      %v613 = vpop.f32.mrf.mxu0
      %v614 = vadd.f32 0.0, %v613
      %615 = vmatmul.bf16.gmra.mxu0 %v571
      %v616 = vpop.f32.mrf.mxu0
      %v617 = vadd.f32 0.0, %v616
      %v618 = vpop.f32.mrf.mxu0
      %v619 = vadd.f32 0.0, %v618
      %620 = vmatmul.bf16.gmra.mxu0 %v574
      %v621 = vpop.f32.mrf.mxu0
      %v622 = vadd.f32 0.0, %v621
      %v623 = vpop.f32.mrf.mxu0
      %v624 = vadd.f32 0.0, %v623
      %625 = vmatmul.bf16.gmra.mxu0 %v577
      %v626 = vpop.f32.mrf.mxu0
      %v627 = vadd.f32 0.0, %v626
      %v628 = vpop.f32.mrf.mxu0
      %v629 = vadd.f32 0.0, %v628
      %630 = vdwg.mxu0
      %v631 = vadd.f32 %v447, %v592
      %v632 = vadd.f32 %v449, %v594
      %v633 = vadd.f32 %v452, %v597
      %v634 = vadd.f32 %v454, %v599
      %v635 = vadd.f32 %v457, %v602
      %v636 = vadd.f32 %v459, %v604
      %v637 = vadd.f32 %v462, %v607
      %v638 = vadd.f32 %v464, %v609
      %v639 = vadd.f32 %v467, %v612
      %v640 = vadd.f32 %v469, %v614
      %v641 = vadd.f32 %v472, %v617
      %v642 = vadd.f32 %v474, %v619
      %v643 = vadd.f32 %v477, %v622
      %v644 = vadd.f32 %v479, %v624
      %v645 = vadd.f32 %v482, %v627
      %v646 = vadd.f32 %v484, %v629
      %v647 = vld [vmem:[%s2] sm:$0x1]
      %v649 = vperm.slane %v647, 0
      %v651 = vadd.f32 %v631, %v649
      %v652 = vadd.f32 %v632, %v649
      %v653 = vadd.f32 %v633, %v649
      %v654 = vadd.f32 %v634, %v649
      %v655 = vadd.f32 %v635, %v649
      %v656 = vadd.f32 %v636, %v649
      %v657 = vadd.f32 %v637, %v649
      %v658 = vadd.f32 %v638, %v649
      %v659 = vadd.f32 %v639, %v649
      %v660 = vadd.f32 %v640, %v649
      %v661 = vadd.f32 %v641, %v649
      %v662 = vadd.f32 %v642, %v649
      %v663 = vadd.f32 %v643, %v649
      %v664 = vadd.f32 %v644, %v649
      %v665 = vadd.f32 %v645, %v649
      %v666 = vadd.f32 %v646, %v649
      %v667 = vmax.f32 %v651, 0.0
      %v668 = vmax.f32 %v652, 0.0
      %v669 = vmax.f32 %v653, 0.0
      %v670 = vmax.f32 %v654, 0.0
      %v671 = vmax.f32 %v655, 0.0
      %v672 = vmax.f32 %v656, 0.0
      %v673 = vmax.f32 %v657, 0.0
      %v674 = vmax.f32 %v658, 0.0
      %v675 = vmax.f32 %v659, 0.0
      %v676 = vmax.f32 %v660, 0.0
      %v677 = vmax.f32 %v661, 0.0
      %v678 = vmax.f32 %v662, 0.0
      %v679 = vmax.f32 %v663, 0.0
      %v680 = vmax.f32 %v664, 0.0
      %v681 = vmax.f32 %v665, 0.0
      %v682 = vmax.f32 %v666, 0.0
      %vm683 = vcmask 64512
      %684 = vst.msk [vmem:[%s192] sm:$0xff] %vm683, %v667
      %685 = vst.msk [vmem:[%s192 + $0x8] sm:$0xff] %vm683, %v668
      %686 = vst.msk [vmem:[%s192 + $0x10] sm:$0xff] %vm683, %v669
      %687 = vst.msk [vmem:[%s192 + $0x18] sm:$0xff] %vm683, %v670
      %688 = vst.msk [vmem:[%s192 + $0x20] sm:$0xff] %vm683, %v671
      %689 = vst.msk [vmem:[%s192 + $0x28] sm:$0xff] %vm683, %v672
      %690 = vst.msk [vmem:[%s192 + $0x30] sm:$0xff] %vm683, %v673
      %691 = vst.msk [vmem:[%s192 + $0x38] sm:$0xff] %vm683, %v674
      %692 = vst.msk [vmem:[%s192 + $0x40] sm:$0xff] %vm683, %v675
      %693 = vst.msk [vmem:[%s192 + $0x48] sm:$0xff] %vm683, %v676
      %694 = vst.msk [vmem:[%s192 + $0x50] sm:$0xff] %vm683, %v677
      %695 = vst.msk [vmem:[%s192 + $0x58] sm:$0xff] %vm683, %v678
      %696 = vst.msk [vmem:[%s192 + $0x60] sm:$0xff] %vm683, %v679
      %697 = vst.msk [vmem:[%s192 + $0x68] sm:$0xff] %vm683, %v680
      %698 = vst.msk [vmem:[%s192 + $0x70] sm:$0xff] %vm683, %v681
      %699 = vst.msk [vmem:[%s192 + $0x78] sm:$0xff] %vm683, %v682
      %s700 = smul.u32 16, %s19
      %p701 = scmp.lt.s32.totalorder %s18, 1
      %s702 = scalar_select %p701, %s18, 1
      %p703 = scmp.lt.s32.totalorder %s700, 31
      %s704 = scalar_select %p703, %s700, 31
      %s705 = smul.addr %s702, 32
      %s706 = sadd.s32 %s704, %s705
      %s707 = smul.addr %s706, 8
      %s708 = scalar_lea.vmem %s3, %s707
      // Predicated region
      $region33: #{basic_conv2d.1} parent=31 // pred_check
        %p709 = pneg %p114
      $region34: #{basic_conv2d.1} parent=31 // pred_check_branch
        %711 = sbr.rel (%p709) target = $region36
      $region35: #{basic_conv2d.1} parent=31 // pred_region
        %s712 = smul.u32 16, %s19
      $region36: #{basic_conv2d.1} parent=31 // pred_fallthru
        _
    $region32: #{basic_conv2d.1} parent=5 // pred_fallthru
      _
    %p713 = scmp.le.s32.totalorder 2, %s9
    // Predicated region
    $region37: #{basic_conv2d.1} parent=5 // pred_check
      %p714 = pneg %p713
    $region38: #{basic_conv2d.1} parent=5 // pred_check_branch
      %716 = sbr.rel (%p714) target = $region40
    $region39: #{basic_conv2d.1} parent=5 // pred_region
      %s717 = ssub.s32 %s9, 2
      // Predicated region
      $region41: #{basic_conv2d.1} parent=39 // pred_check
        %p718 = pneg %p120
      $region42: #{basic_conv2d.1} parent=39 // pred_check_branch
        %720 = sbr.rel (%p718) target = $region44
      $region43: #{basic_conv2d.1} parent=39 // pred_region
        %s721 = smul.u32 16, %s21
        %p722 = scmp.lt.s32.totalorder %s20, 1
        %s723 = scalar_select %p722, %s20, 1
        %p724 = scmp.lt.s32.totalorder %s721, 31
        %s725 = scalar_select %p724, %s721, 31
        %s726 = smul.addr %s723, 32
        %s727 = sadd.s32 %s725, %s726
        %s728 = smul.addr %s727, 8
        %s729 = scalar_lea.vmem %s3, %s728
      $region44: #{basic_conv2d.1} parent=39 // pred_fallthru
        _
    $region40: #{basic_conv2d.1} parent=5 // pred_fallthru
      _
  $region6: #{basic_conv2d.1} parent=0 // loop_footer
    %s13 = sadd.s32 1, %s9
  $region7: #{basic_conv2d.1} parent=0 // loop_footer_branch
    %8 = sbr.rel target = $region3
  $region8: #{basic_conv2d.1} parent=0 // loop_exit
    _

</llo_original>
